<compile_context>
chip_gen: v6e
topology: v6e:2x2x1
jax: 0.10.0
libtpu: 0.0.40
codegen_flags: <defaults>
</compile_context>

<pallas_src>
import functools

import jax
import jax.numpy as jnp
from jax import lax
from jax.experimental import pallas as pl
from jax.experimental.pallas import tpu as pltpu


def _round_up(x, m):
    return ((x + m - 1) // m) * m


def _feature_kernel(x_ref, w_ref, b_ref, pool_ref, o_ref, *,
                    height, width, hw, c_pad, cout_pad):
    """One batch tile: 3x3 SAME conv (single fused MXU matmul) + bias + ReLU + global avg pool.

    x_ref:    (c_pad, N)           bf16  flattened NCHW tile, N = bt*H*W (spatial+batch on lanes)
    w_ref:    (cout_pad, 9*c_pad)  bf16  tap-packed conv weights (zero padded), VMEM-resident
    b_ref:    (cout_pad, 1)        f32   bias (zero padded), VMEM-resident
    pool_ref: (bt, N)              bf16  0/1 block-diagonal image selector, VMEM-resident
    o_ref:    (bt, cout_pad)       f32   pooled + flattened features (lane-dense store)
    """
    x = x_ref[...].astype(jnp.float32)                 # (c_pad, N) f32 (v5e-safe elementwise)
    n = x.shape[1]

    # Per-lane image geometry generated in-kernel (no mask DMA). Power-of-two fast path.
    lane = lax.broadcasted_iota(jnp.int32, (c_pad, n), 1)
    if hw & (hw - 1) == 0:
        hwpos = lane & (hw - 1)
    else:
        hwpos = lane % hw
    if width & (width - 1) == 0:
        hpos = hwpos >> (width.bit_length() - 1)
        wpos = hwpos & (width - 1)
    else:
        hpos = hwpos // width
        wpos = hwpos % width

    # Nine shifted taps via XLU lane rotation, zero-masked at image borders (this also
    # kills every wrap across rows / images / the slab boundary), stacked along sublanes.
    taps = []
    for di in (-1, 0, 1):
        for dj in (-1, 0, 1):
            off = di * width + dj
            shift = (-off) % n                          # jnp.roll semantics: out[p] = x[p+off]
            xs = x if shift == 0 else pltpu.roll(x, shift, axis=1)
            conds = []
            if di < 0:
                conds.append(hpos >= -di)
            if di > 0:
                conds.append(hpos < height - di)
            if dj < 0:
                conds.append(wpos >= -dj)
            if dj > 0:
                conds.append(wpos < width - dj)
            if conds:
                valid = functools.reduce(lambda a, b: a & b, conds)
                xs = jnp.where(valid, xs, 0.0)
            taps.append(xs)
    # f32 pieces have 8-row granularity -> tile-aligned sublane concat; single bf16 cast.
    stacked = jnp.concatenate(taps, axis=0).astype(jnp.bfloat16)        # (9*c_pad, N)

    # Conv = one K = 9*c_pad bf16 MXU matmul with f32 accumulation.
    acc = jnp.dot(w_ref[...], stacked, preferred_element_type=jnp.float32)  # (cout_pad, N)
    act = jnp.maximum(acc + b_ref[...], 0.0)                                # f32 epilogue

    # Global average pool on the MXU: bf16 operands, f32 accumulate, exact 1/HW scale after.
    pooled = lax.dot_general(
        pool_ref[...], act.astype(jnp.bfloat16),
        dimension_numbers=(((1,), (1,)), ((), ())),
        preferred_element_type=jnp.float32)                                 # (bt, cout_pad)
    o_ref[...] = pooled * (1.0 / hw)


def _vmem_footprint(bt, hw, c_pad, cout_pad):
    """Conservative per-grid-step VMEM estimate (bytes), incl. pipeline double buffers."""
    n = bt * hw
    f = 0
    f += 2 * c_pad * n * 2                 # x tile (bf16, double buffered)
    f += c_pad * n * 4                     # x promoted to f32
    f += 9 * c_pad * n * 4                 # nine rolled/masked f32 taps
    f += 9 * c_pad * n * 4                 # concatenated f32 operand
    f += 9 * c_pad * n * 2                 # bf16 cast of the stacked operand
    f += cout_pad * n * 4                  # f32 conv accumulator / activations
    f += cout_pad * n * 2                  # bf16 activations for the pooling matmul
    f += 2 * cout_pad * 9 * c_pad * 2      # resident weights (double buffered by pipeline)
    f += 2 * bt * n * 2                    # pooling matrix (double buffered)
    f += 2 * bt * cout_pad * 4             # output tile
    f += 2 * 1024 * 1024                   # slack for compiler temporaries / fragmentation
    return f


def _tpu_vmem_limit_bytes():
    cap = None
    try:
        cap = getattr(pltpu.get_tpu_info(), "vmem_capacity_bytes", None)
    except Exception:
        cap = None
    if not cap:
        cap = 64 * 1024 * 1024             # conservative (v7x per-core VMEM)
    # ~96 MiB on 128 MiB parts (v5e/v6e), ~48 MiB on 64 MiB parts (v7x).
    return int(min(cap * 3 // 4, 100 * 1024 * 1024))


def _num_tensorcores():
    try:
        info = pltpu.get_tpu_info()
        for name in ("num_cores", "tensorcore_count", "num_tensorcores", "cores_per_chip"):
            v = getattr(info, name, None)
            if isinstance(v, int) and v > 0:
                return v
    except Exception:
        pass
    return 1


def _pick_batch_tile(B, hw, c_pad, cout_pad, budget, n_cores):
    divisors = [d for d in range(1, B + 1) if B % d == 0]

    def lane_ok(d):   # last BlockSpec dim: multiple of 128 or the full array dim
        return d == B or (d * hw) % 128 == 0

    def sub_ok(d):    # output sublane dim: multiple of 8 or the full batch dim
        return d == B or d % 8 == 0

    def fits(d):
        return _vmem_footprint(d, hw, c_pad, cout_pad) <= budget

    cand = [d for d in divisors if lane_ok(d) and sub_ok(d) and fits(d)]
    if not cand:
        cand = [d for d in divisors if lane_ok(d) and fits(d)]
    if not cand:
        lane_cands = [d for d in divisors if lane_ok(d)]
        cand = [min(lane_cands)] if lane_cands else [B]

    bt = max(cand)    # single TC (v5e/v6e): fewer, fatter steps amortize pipeline overhead
    if n_cores >= 2 and bt == B:
        # multi-TC (v7x): keep >=2 parallel grid steps if a multiple-of-8 tile allows it
        multi = [d for d in cand if d < B and d % 8 == 0]
        if multi:
            bt = max(multi)
    return bt


def feature_extractor_forward(x, conv_w, conv_b):
    """x: (B, C, H, W) NCHW; conv_w: (Cout, C, 3, 3); conv_b: (Cout,) -> (B, Cout)."""
    B, C, H, W = x.shape
    Cout, Cin, KH, KW = conv_w.shape
    assert Cin == C and (KH, KW) == (3, 3)
    HW = H * W
    cout_pad = _round_up(Cout, 128)
    c_pad = _round_up(C, 8)

    vmem_limit = _tpu_vmem_limit_bytes()
    bt = _pick_batch_tile(B, HW, c_pad, cout_pad, vmem_limit, _num_tensorcores())
    grid_b = B // bt

    # Input: NCHW -> (c_pad, B*H*W) bf16 (channels on sublanes, spatial+batch on lanes).
    x_flat = jnp.transpose(x, (1, 0, 2, 3)).reshape(C, B * HW)
    x_flat = jnp.pad(x_flat, ((0, c_pad - C), (0, 0))).astype(jnp.bfloat16)

    # Weights: (Cout, C, 3, 3) -> (cout_pad, 9*c_pad); tap s = (di+1)*3 + (dj+1) major,
    # channel minor, zero-padded so padded rows/cols contribute exactly zero.
    w = jnp.transpose(conv_w.reshape(Cout, C, KH * KW), (0, 2, 1))        # (Cout, 9, C)
    w = jnp.pad(w, ((0, cout_pad - Cout), (0, 0), (0, c_pad - C)))        # (cout_pad, 9, c_pad)
    w_packed = w.reshape(cout_pad, 9 * c_pad).astype(jnp.bfloat16)

    b_pad = jnp.pad(conv_b.astype(jnp.float32), (0, cout_pad - Cout)).reshape(cout_pad, 1)

    # 0/1 block-diagonal image selector for the pooling matmul (bf16-exact; 1/HW applied
    # as an f32 scalar inside the kernel).
    pool = jnp.repeat(jnp.eye(bt, dtype=jnp.bfloat16), HW, axis=1)        # (bt, bt*HW)

    kernel = functools.partial(_feature_kernel, height=H, width=W, hw=HW,
                               c_pad=c_pad, cout_pad=cout_pad)

    out_pad = pl.pallas_call(
        kernel,
        out_shape=jax.ShapeDtypeStruct((B, cout_pad), jnp.float32),
        grid_spec=pltpu.PrefetchScalarGridSpec(
            num_scalar_prefetch=0,
            grid=(grid_b,),
            in_specs=[
                pl.BlockSpec((c_pad, bt * HW), lambda i: (0, i)),
                pl.BlockSpec((cout_pad, 9 * c_pad), lambda i: (0, 0)),   # resident constants
                pl.BlockSpec((cout_pad, 1), lambda i: (0, 0)),
                pl.BlockSpec((bt, bt * HW), lambda i: (0, 0)),
            ],
            out_specs=pl.BlockSpec((bt, cout_pad), lambda i: (i, 0)),
        ),
        compiler_params=pltpu.CompilerParams(
            dimension_semantics=("parallel",),
            vmem_limit_bytes=vmem_limit,
        ),
    )(x_flat, w_packed, b_pad, pool)

    return out_pad[:, :Cout]          # drop lane padding; (B, Cout) == flattened features


def reference_forward(x, conv_w, conv_b):
    """Plain-JAX f32 reference: conv(NCHW, SAME) -> ReLU -> global avg pool -> flatten."""
    conv = lax.conv_general_dilated(
        x.astype(jnp.float32), conv_w.astype(jnp.float32),
        window_strides=(1, 1), padding="SAME",
        dimension_numbers=("NCHW", "OIHW", "NCHW"))
    conv = conv + conv_b.reshape(1, -1, 1, 1)
    act = jnp.maximum(conv, 0.0)
    pooled = jnp.mean(act, axis=(2, 3))                 # (B, Cout)
    return pooled.reshape(pooled.shape[0], -1)


if __name__ == "__main__":
    B, C, H, W = 2, 4, 16, 16
    Cout, KH, KW = 8, 3, 3

    key = jax.random.PRNGKey(0)
    kx, kw_, kb = jax.random.split(key, 3)
    x = jax.random.normal(kx, (B, C, H, W), dtype=jnp.float32)
    conv_w = jax.random.normal(kw_, (Cout, C, KH, KW), dtype=jnp.float32) * 0.1
    conv_b = jax.random.normal(kb, (Cout,), dtype=jnp.float32) * 0.1

    fwd = jax.jit(feature_extractor_forward)
    out = jax.block_until_ready(fwd(x, conv_w, conv_b))
    ref = jax.block_until_ready(reference_forward(x, conv_w, conv_b))

    assert out.shape == (B, Cout), out.shape
    # Conv and pooling matmuls run with bf16 operands (f32 accumulate); allow a small
    # tolerance vs the f32 reference.
    assert jnp.allclose(out, ref, atol=2e-2, rtol=2e-2), (out, ref)
    print("KERNEL_OK")
</pallas_src>

<mosaic_0001>
module attributes {stable_mosaic.version = 11 : i64} {
  func.func @_feature_kernel(%arg0: i32, %arg1: memref<8x512xbf16, #tpu.memory_space<vmem>>, %arg2: memref<128x72xbf16, #tpu.memory_space<vmem>>, %arg3: memref<128x1xf32, #tpu.memory_space<vmem>>, %arg4: memref<2x512xbf16, #tpu.memory_space<vmem>>, %arg5: memref<2x128xf32, #tpu.memory_space<vmem>>) attributes {dimension_semantics = [#tpu.dimension_semantics<parallel>], iteration_bounds = array<i64: 1>, scalar_prefetch = 0 : i64, scratch_operands = 0 : i64, tpu.core_type = #tpu.core_type<tc>, window_params = [{transform_indices = @transform_0, window_bounds = array<i64: 8, 512>}, {pipeline_mode = #tpu.pipeline_mode<synchronous>, transform_indices = @transform_1, window_bounds = array<i64: 128, 72>}, {pipeline_mode = #tpu.pipeline_mode<synchronous>, transform_indices = @transform_2, window_bounds = array<i64: 128, 1>}, {pipeline_mode = #tpu.pipeline_mode<synchronous>, transform_indices = @transform_3, window_bounds = array<i64: 2, 512>}, {transform_indices = @transform_4, window_bounds = array<i64: 2, 128>}]} {
    %c0 = arith.constant 0 : index
    %c0_0 = arith.constant 0 : index
    %0 = vector.load %arg1[%c0, %c0_0] : memref<8x512xbf16, #tpu.memory_space<vmem>>, vector<8x512xbf16>
    %1 = arith.extf %0 : vector<8x512xbf16> to vector<8x512xf32>
    %2 = tpu.iota {dimensions = array<i32: 1>} : vector<8x512xi32>
    %c255_i32 = arith.constant 255 : i32
    %3 = vector.broadcast %c255_i32 : i32 to vector<8x512xi32>
    %4 = arith.andi %2, %3 : vector<8x512xi32>
    %c4_i32 = arith.constant 4 : i32
    %5 = vector.broadcast %c4_i32 : i32 to vector<8x512xi32>
    %6 = arith.shrsi %4, %5 : vector<8x512xi32>
    %c15_i32 = arith.constant 15 : i32
    %7 = vector.broadcast %c15_i32 : i32 to vector<8x512xi32>
    %8 = arith.andi %4, %7 : vector<8x512xi32>
    %c17_i32 = arith.constant 17 : i32
    %9 = tpu.dynamic_rotate %1 by %c17_i32 dim 1 : vector<8x512xf32>, i32 -> vector<8x512xf32>
    %c1_i32 = arith.constant 1 : i32
    %10 = vector.broadcast %c1_i32 : i32 to vector<8x512xi32>
    %11 = arith.cmpi sge, %6, %10 : vector<8x512xi32>
    %c1_i32_1 = arith.constant 1 : i32
    %12 = vector.broadcast %c1_i32_1 : i32 to vector<8x512xi32>
    %13 = arith.cmpi sge, %8, %12 : vector<8x512xi32>
    %14 = arith.andi %11, %13 : vector<8x512xi1>
    %cst = arith.constant 0.000000e+00 : f32
    %15 = vector.broadcast %cst : f32 to vector<8x512xf32>
    %16 = arith.select %14, %9, %15 : vector<8x512xi1>, vector<8x512xf32>
    %c16_i32 = arith.constant 16 : i32
    %17 = tpu.dynamic_rotate %1 by %c16_i32 dim 1 : vector<8x512xf32>, i32 -> vector<8x512xf32>
    %c1_i32_2 = arith.constant 1 : i32
    %18 = vector.broadcast %c1_i32_2 : i32 to vector<8x512xi32>
    %19 = arith.cmpi sge, %6, %18 : vector<8x512xi32>
    %cst_3 = arith.constant 0.000000e+00 : f32
    %20 = vector.broadcast %cst_3 : f32 to vector<8x512xf32>
    %21 = arith.select %19, %17, %20 : vector<8x512xi1>, vector<8x512xf32>
    %c15_i32_4 = arith.constant 15 : i32
    %22 = tpu.dynamic_rotate %1 by %c15_i32_4 dim 1 : vector<8x512xf32>, i32 -> vector<8x512xf32>
    %c1_i32_5 = arith.constant 1 : i32
    %23 = vector.broadcast %c1_i32_5 : i32 to vector<8x512xi32>
    %24 = arith.cmpi sge, %6, %23 : vector<8x512xi32>
    %c15_i32_6 = arith.constant 15 : i32
    %25 = vector.broadcast %c15_i32_6 : i32 to vector<8x512xi32>
    %26 = arith.cmpi slt, %8, %25 : vector<8x512xi32>
    %27 = arith.andi %24, %26 : vector<8x512xi1>
    %cst_7 = arith.constant 0.000000e+00 : f32
    %28 = vector.broadcast %cst_7 : f32 to vector<8x512xf32>
    %29 = arith.select %27, %22, %28 : vector<8x512xi1>, vector<8x512xf32>
    %c1_i32_8 = arith.constant 1 : i32
    %30 = tpu.dynamic_rotate %1 by %c1_i32_8 dim 1 : vector<8x512xf32>, i32 -> vector<8x512xf32>
    %c1_i32_9 = arith.constant 1 : i32
    %31 = vector.broadcast %c1_i32_9 : i32 to vector<8x512xi32>
    %32 = arith.cmpi sge, %8, %31 : vector<8x512xi32>
    %cst_10 = arith.constant 0.000000e+00 : f32
    %33 = vector.broadcast %cst_10 : f32 to vector<8x512xf32>
    %34 = arith.select %32, %30, %33 : vector<8x512xi1>, vector<8x512xf32>
    %c511_i32 = arith.constant 511 : i32
    %35 = tpu.dynamic_rotate %1 by %c511_i32 dim 1 : vector<8x512xf32>, i32 -> vector<8x512xf32>
    %c15_i32_11 = arith.constant 15 : i32
    %36 = vector.broadcast %c15_i32_11 : i32 to vector<8x512xi32>
    %37 = arith.cmpi slt, %8, %36 : vector<8x512xi32>
    %cst_12 = arith.constant 0.000000e+00 : f32
    %38 = vector.broadcast %cst_12 : f32 to vector<8x512xf32>
    %39 = arith.select %37, %35, %38 : vector<8x512xi1>, vector<8x512xf32>
    %c497_i32 = arith.constant 497 : i32
    %40 = tpu.dynamic_rotate %1 by %c497_i32 dim 1 : vector<8x512xf32>, i32 -> vector<8x512xf32>
    %c15_i32_13 = arith.constant 15 : i32
    %41 = vector.broadcast %c15_i32_13 : i32 to vector<8x512xi32>
    %42 = arith.cmpi slt, %6, %41 : vector<8x512xi32>
    %c1_i32_14 = arith.constant 1 : i32
    %43 = vector.broadcast %c1_i32_14 : i32 to vector<8x512xi32>
    %44 = arith.cmpi sge, %8, %43 : vector<8x512xi32>
    %45 = arith.andi %42, %44 : vector<8x512xi1>
    %cst_15 = arith.constant 0.000000e+00 : f32
    %46 = vector.broadcast %cst_15 : f32 to vector<8x512xf32>
    %47 = arith.select %45, %40, %46 : vector<8x512xi1>, vector<8x512xf32>
    %c496_i32 = arith.constant 496 : i32
    %48 = tpu.dynamic_rotate %1 by %c496_i32 dim 1 : vector<8x512xf32>, i32 -> vector<8x512xf32>
    %c15_i32_16 = arith.constant 15 : i32
    %49 = vector.broadcast %c15_i32_16 : i32 to vector<8x512xi32>
    %50 = arith.cmpi slt, %6, %49 : vector<8x512xi32>
    %cst_17 = arith.constant 0.000000e+00 : f32
    %51 = vector.broadcast %cst_17 : f32 to vector<8x512xf32>
    %52 = arith.select %50, %48, %51 : vector<8x512xi1>, vector<8x512xf32>
    %c495_i32 = arith.constant 495 : i32
    %53 = tpu.dynamic_rotate %1 by %c495_i32 dim 1 : vector<8x512xf32>, i32 -> vector<8x512xf32>
    %c15_i32_18 = arith.constant 15 : i32
    %54 = vector.broadcast %c15_i32_18 : i32 to vector<8x512xi32>
    %55 = arith.cmpi slt, %6, %54 : vector<8x512xi32>
    %c15_i32_19 = arith.constant 15 : i32
    %56 = vector.broadcast %c15_i32_19 : i32 to vector<8x512xi32>
    %57 = arith.cmpi slt, %8, %56 : vector<8x512xi32>
    %58 = arith.andi %55, %57 : vector<8x512xi1>
    %cst_20 = arith.constant 0.000000e+00 : f32
    %59 = vector.broadcast %cst_20 : f32 to vector<8x512xf32>
    %60 = arith.select %58, %53, %59 : vector<8x512xi1>, vector<8x512xf32>
    %61 = tpu.concatenate %16, %21, %29, %34, %1, %39, %47, %52, %60 in 0 : vector<8x512xf32>, vector<8x512xf32>, vector<8x512xf32>, vector<8x512xf32>, vector<8x512xf32>, vector<8x512xf32>, vector<8x512xf32>, vector<8x512xf32>, vector<8x512xf32> -> vector<72x512xf32>
    %62 = arith.truncf %61 : vector<72x512xf32> to vector<72x512xbf16>
    %c0_21 = arith.constant 0 : index
    %c0_22 = arith.constant 0 : index
    %63 = vector.load %arg2[%c0_21, %c0_22] : memref<128x72xbf16, #tpu.memory_space<vmem>>, vector<128x72xbf16>
    %cst_23 = arith.constant dense<0.000000e+00> : vector<128x512xf32>
    %64 = tpu.matmul %63, %62, %cst_23 {dimension_numbers = #tpu.dot_dimension_numbers<[1], [0], [0], [1], [0, 0, 1, 1], [], []>} : vector<128x72xbf16>, vector<72x512xbf16>, vector<128x512xf32> -> vector<128x512xf32>
    %c0_24 = arith.constant 0 : index
    %c0_25 = arith.constant 0 : index
    %65 = vector.load %arg3[%c0_24, %c0_25] : memref<128x1xf32, #tpu.memory_space<vmem>>, vector<128x1xf32>
    %66 = vector.broadcast %65 : vector<128x1xf32> to vector<128x512xf32>
    %67 = arith.addf %64, %66 : vector<128x512xf32>
    %cst_26 = arith.constant 0.000000e+00 : f32
    %68 = vector.broadcast %cst_26 : f32 to vector<128x512xf32>
    %69 = arith.maximumf %67, %68 : vector<128x512xf32>
    %c0_27 = arith.constant 0 : index
    %c0_28 = arith.constant 0 : index
    %70 = vector.load %arg4[%c0_27, %c0_28] : memref<2x512xbf16, #tpu.memory_space<vmem>>, vector<2x512xbf16>
    %71 = arith.truncf %69 : vector<128x512xf32> to vector<128x512xbf16>
    %cst_29 = arith.constant dense<0.000000e+00> : vector<2x128xf32>
    %72 = tpu.matmul %70, %71, %cst_29 {dimension_numbers = #tpu.dot_dimension_numbers<[1], [1], [0], [0], [0, 0, 1, 0], [], []>} : vector<2x512xbf16>, vector<128x512xbf16>, vector<2x128xf32> -> vector<2x128xf32>
    %cst_30 = arith.constant 3.906250e-03 : f32
    %73 = vector.broadcast %cst_30 : f32 to vector<2x128xf32>
    %74 = arith.mulf %72, %73 : vector<2x128xf32>
    %c0_31 = arith.constant 0 : index
    %c0_32 = arith.constant 0 : index
    %75 = vector.load %arg5[%c0_31, %c0_32] : memref<2x128xf32, #tpu.memory_space<vmem>>, vector<2x128xf32>
    tpu.vector_store %arg5[%c0_31, %c0_32], %74 {strides = array<i32>} : memref<2x128xf32, #tpu.memory_space<vmem>>, vector<2x128xf32>,
    return
  }
  func.func @transform_0(%arg0: i32) -> (i32, i32) {
    %c0_i32 = arith.constant 0 : i32
    %c0_i32_0 = arith.constant 0 : i32
    return %c0_i32, %arg0 : i32, i32
  }
  func.func @transform_1(%arg0: i32) -> (i32, i32) {
    %c0_i32 = arith.constant 0 : i32
    %c0_i32_0 = arith.constant 0 : i32
    %c0_i32_1 = arith.constant 0 : i32
    return %c0_i32, %c0_i32_0 : i32, i32
  }
  func.func @transform_2(%arg0: i32) -> (i32, i32) {
    %c0_i32 = arith.constant 0 : i32
    %c0_i32_0 = arith.constant 0 : i32
    %c0_i32_1 = arith.constant 0 : i32
    return %c0_i32, %c0_i32_0 : i32, i32
  }
  func.func @transform_3(%arg0: i32) -> (i32, i32) {
    %c0_i32 = arith.constant 0 : i32
    %c0_i32_0 = arith.constant 0 : i32
    %c0_i32_1 = arith.constant 0 : i32
    return %c0_i32, %c0_i32_0 : i32, i32
  }
  func.func @transform_4(%arg0: i32) -> (i32, i32) {
    %c0_i32 = arith.constant 0 : i32
    %c0_i32_0 = arith.constant 0 : i32
    return %arg0, %c0_i32 : i32, i32
  }
}

</mosaic_0001>

<llo_original>
// kernel: feature_extractor_forward.1
$region0: #{feature_extractor_forward.1}
  #allocation0 [shape = 'u32[]', space=smem, size = 0x4, offset = 0x4, fixed_abs, tag = 'smem constant byte address 0x4 - core index']
  #allocation1 [shape = 'u32[144,128]{1,0:T(1,128)}', space=vmem, size = 0x12000, scoped, tag = 'internal scratch']
  %s0 = inlined_call_operand.vmem [shape: bf16[8,512], index: 0, kind: input, shape index: {}]
  %s1 = inlined_call_operand.vmem [shape: bf16[128,72], index: 1, kind: input, shape index: {}]
  %s2 = inlined_call_operand.vmem [shape: f32[128,1], index: 2, kind: input, shape index: {}]
  %s3 = inlined_call_operand.vmem [shape: bf16[2,512], index: 3, kind: input, shape index: {}]
  %s4 = inlined_call_operand.hbm [shape: f32[2,128], index: 4, kind: output, shape index: {}]
  %s5 = sld [smem:[#allocation0]]
  $region26: #{feature_extractor_forward.1} parent=0
    _
  %s7 = ssub.s32 1, %s5
  %s8 = scalar_select 0, %s7, %s5
  $region1: #{feature_extractor_forward.1} parent=0
    #allocation2 [shape = 'u8[1024]{0}', space=vmem, size = 0x400, scoped, tag = 'output window, operand 0, single buffered']
    #allocation3 [shape = 's32[1]{0}', space=sflag, size = 0x4, scoped, tag = 'scoped memory for feature_extractor_forward.1']
    %9 = vsyncpa [#allocation3], 0
    // Predicated region
    $region2: #{feature_extractor_forward.1} parent=1 // pred_check
      _
    $region3: #{feature_extractor_forward.1} parent=1 // pred_check_branch
      %11 = sbr.rel (0) target = $region5
    $region4: #{feature_extractor_forward.1} parent=1 // pred_region
      _
    $region5: #{feature_extractor_forward.1} parent=1 // pred_fallthru
      _
    // Predicated region
    $region6: #{feature_extractor_forward.1} parent=1 // pred_check
      _
    $region7: #{feature_extractor_forward.1} parent=1 // pred_check_branch
      %13 = sbr.rel (0) target = $region9
    $region8: #{feature_extractor_forward.1} parent=1 // pred_region
      _
    $region9: #{feature_extractor_forward.1} parent=1 // pred_fallthru
      _
    // Predicated region
    $region10: #{feature_extractor_forward.1} parent=1 // pred_check
      _
    $region11: #{feature_extractor_forward.1} parent=1 // pred_check_branch
      %15 = sbr.rel (0) target = $region13
    $region12: #{feature_extractor_forward.1} parent=1 // pred_region
      _
    $region13: #{feature_extractor_forward.1} parent=1 // pred_fallthru
      _
    // Predicated region
    $region14: #{feature_extractor_forward.1} parent=1 // pred_check
      _
    $region15: #{feature_extractor_forward.1} parent=1 // pred_check_branch
      %17 = sbr.rel (0) target = $region17
    $region16: #{feature_extractor_forward.1} parent=1 // pred_region
      _
    $region17: #{feature_extractor_forward.1} parent=1 // pred_fallthru
      _
    %v19 = vld [vmem:[%s0] sm:$0xff]
    %v20 = vld [vmem:[%s0 + $0x8] sm:$0xff]
    %v21 = vunpack.c.l.bf16 %v19
    %v22 = vunpack.c.h.bf16 %v19
    %v23 = vunpack.c.l.bf16 %v20
    %v24 = vunpack.c.h.bf16 %v20
    %v25 = vlaneseq
    %v26 = vand.u32 %v25, 127
    %v27 = vadd.s32 %v26, 128
    %v28 = vadd.s32 %v26, 256
    %v29 = vadd.s32 %v26, 384
    %v30 = vand.u32 %v26, 255
    %v31 = vand.u32 %v27, 255
    %v32 = vand.u32 %v28, 255
    %v33 = vand.u32 %v29, 255
    %v34 = vshra.s32 %v30, 4
    %v35 = vshra.s32 %v31, 4
    %v36 = vshra.s32 %v32, 4
    %v37 = vshra.s32 %v33, 4
    %v38 = vand.u32 %v30, 15
    %v39 = vand.u32 %v31, 15
    %v40 = vand.u32 %v32, 15
    %v41 = vand.u32 %v33, 15
    %42 = vrot.lane.b32.xlu0 %v21, 17
    %v43 = vpop.permute.xlu0 %42
    %44 = vrot.lane.b32.xlu0 %v22, 17
    %v45 = vpop.permute.xlu0 %44
    %46 = vrot.lane.b32.xlu0 %v23, 17
    %v47 = vpop.permute.xlu0 %46
    %48 = vrot.lane.b32.xlu0 %v24, 17
    %v49 = vpop.permute.xlu0 %48
    %vm50 = vcmp.lt.s32.totalorder %v26, 17
    %v51 = vsel %vm50, %v47, %v49
    %v52 = vsel %vm50, %v45, %v47
    %v53 = vsel %vm50, %v43, %v45
    %v54 = vsel %vm50, %v49, %v43
    %vm55 = vcmp.ge.s32.totalorder %v34, 1
    %vm56 = vcmp.ge.s32.totalorder %v35, 1
    %vm57 = vcmp.ge.s32.totalorder %v36, 1
    %vm58 = vcmp.ge.s32.totalorder %v37, 1
    %vm59 = vcmp.ge.s32.totalorder %v38, 1
    %vm60 = vcmp.ge.s32.totalorder %v39, 1
    %vm61 = vcmp.ge.s32.totalorder %v40, 1
    %vm62 = vcmp.ge.s32.totalorder %v41, 1
    %vm63 = vmand %vm55, %vm59
    %vm64 = vmand %vm56, %vm60
    %vm65 = vmand %vm57, %vm61
    %vm66 = vmand %vm58, %vm62
    %v67 = vsel %vm63, %v54, 0.0
    %v68 = vsel %vm64, %v53, 0.0
    %v69 = vsel %vm65, %v52, 0.0
    %v70 = vsel %vm66, %v51, 0.0
    %71 = vrot.lane.b32.xlu0 %v21, 16
    %v72 = vpop.permute.xlu0 %71
    %73 = vrot.lane.b32.xlu0 %v22, 16
    %v74 = vpop.permute.xlu0 %73
    %75 = vrot.lane.b32.xlu0 %v23, 16
    %v76 = vpop.permute.xlu0 %75
    %77 = vrot.lane.b32.xlu0 %v24, 16
    %v78 = vpop.permute.xlu0 %77
    %vm79 = vcmp.lt.s32.totalorder %v26, 16
    %v80 = vsel %vm79, %v76, %v78
    %v81 = vsel %vm79, %v74, %v76
    %v82 = vsel %vm79, %v72, %v74
    %v83 = vsel %vm79, %v78, %v72
    %v84 = vsel %vm55, %v83, 0.0
    %v85 = vsel %vm56, %v82, 0.0
    %v86 = vsel %vm57, %v81, 0.0
    %v87 = vsel %vm58, %v80, 0.0
    %88 = vrot.lane.b32.xlu0 %v21, 15
    %v89 = vpop.permute.xlu0 %88
    %90 = vrot.lane.b32.xlu0 %v22, 15
    %v91 = vpop.permute.xlu0 %90
    %92 = vrot.lane.b32.xlu0 %v23, 15
    %v93 = vpop.permute.xlu0 %92
    %94 = vrot.lane.b32.xlu0 %v24, 15
    %v95 = vpop.permute.xlu0 %94
    %vm96 = vcmp.lt.s32.totalorder %v26, 15
    %v97 = vsel %vm96, %v93, %v95
    %v98 = vsel %vm96, %v91, %v93
    %v99 = vsel %vm96, %v89, %v91
    %v100 = vsel %vm96, %v95, %v89
    %vm101 = vcmp.lt.s32.totalorder %v38, 15
    %vm102 = vcmp.lt.s32.totalorder %v39, 15
    %vm103 = vcmp.lt.s32.totalorder %v40, 15
    %vm104 = vcmp.lt.s32.totalorder %v41, 15
    %vm105 = vmand %vm55, %vm101
    %vm106 = vmand %vm56, %vm102
    %vm107 = vmand %vm57, %vm103
    %vm108 = vmand %vm58, %vm104
    %v109 = vsel %vm105, %v100, 0.0
    %v110 = vsel %vm106, %v99, 0.0
    %v111 = vsel %vm107, %v98, 0.0
    %v112 = vsel %vm108, %v97, 0.0
    %113 = vrot.lane.b32.xlu0 %v21, 1
    %v114 = vpop.permute.xlu0 %113
    %115 = vrot.lane.b32.xlu0 %v22, 1
    %v116 = vpop.permute.xlu0 %115
    %117 = vrot.lane.b32.xlu0 %v23, 1
    %v118 = vpop.permute.xlu0 %117
    %119 = vrot.lane.b32.xlu0 %v24, 1
    %v120 = vpop.permute.xlu0 %119
    %vm121 = vcmp.lt.s32.totalorder %v26, 1
    %v122 = vsel %vm121, %v118, %v120
    %v123 = vsel %vm121, %v116, %v118
    %v124 = vsel %vm121, %v114, %v116
    %v125 = vsel %vm121, %v120, %v114
    %v126 = vsel %vm59, %v125, 0.0
    %v127 = vsel %vm60, %v124, 0.0
    %v128 = vsel %vm61, %v123, 0.0
    %v129 = vsel %vm62, %v122, 0.0
    %130 = vrot.lane.b32.xlu0 %v21, 127
    %v131 = vpop.permute.xlu0 %130
    %132 = vrot.lane.b32.xlu0 %v22, 127
    %v133 = vpop.permute.xlu0 %132
    %134 = vrot.lane.b32.xlu0 %v23, 127
    %v135 = vpop.permute.xlu0 %134
    %136 = vrot.lane.b32.xlu0 %v24, 127
    %v137 = vpop.permute.xlu0 %136
    %vm138 = vcmp.lt.s32.totalorder %v26, 127
    %v139 = vsel %vm138, %v135, %v137
    %v140 = vsel %vm138, %v133, %v135
    %v141 = vsel %vm138, %v131, %v133
    %v142 = vsel %vm138, %v137, %v131
    %v143 = vsel %vm101, %v141, 0.0
    %v144 = vsel %vm102, %v140, 0.0
    %v145 = vsel %vm103, %v139, 0.0
    %v146 = vsel %vm104, %v142, 0.0
    %147 = vrot.lane.b32.xlu0 %v21, 113
    %v148 = vpop.permute.xlu0 %147
    %149 = vrot.lane.b32.xlu0 %v22, 113
    %v150 = vpop.permute.xlu0 %149
    %151 = vrot.lane.b32.xlu0 %v23, 113
    %v152 = vpop.permute.xlu0 %151
    %153 = vrot.lane.b32.xlu0 %v24, 113
    %v154 = vpop.permute.xlu0 %153
    %vm155 = vcmp.lt.s32.totalorder %v26, 113
    %v156 = vsel %vm155, %v152, %v154
    %v157 = vsel %vm155, %v150, %v152
    %v158 = vsel %vm155, %v148, %v150
    %v159 = vsel %vm155, %v154, %v148
    %vm160 = vcmp.lt.s32.totalorder %v34, 15
    %vm161 = vcmp.lt.s32.totalorder %v35, 15
    %vm162 = vcmp.lt.s32.totalorder %v36, 15
    %vm163 = vcmp.lt.s32.totalorder %v37, 15
    %vm164 = vmand %vm160, %vm59
    %vm165 = vmand %vm161, %vm60
    %vm166 = vmand %vm162, %vm61
    %vm167 = vmand %vm163, %vm62
    %v168 = vsel %vm164, %v158, 0.0
    %v169 = vsel %vm165, %v157, 0.0
    %v170 = vsel %vm166, %v156, 0.0
    %v171 = vsel %vm167, %v159, 0.0
    %172 = vrot.lane.b32.xlu0 %v21, 112
    %v173 = vpop.permute.xlu0 %172
    %174 = vrot.lane.b32.xlu0 %v22, 112
    %v175 = vpop.permute.xlu0 %174
    %176 = vrot.lane.b32.xlu0 %v23, 112
    %v177 = vpop.permute.xlu0 %176
    %178 = vrot.lane.b32.xlu0 %v24, 112
    %v179 = vpop.permute.xlu0 %178
    %vm180 = vcmp.lt.s32.totalorder %v26, 112
    %v181 = vsel %vm180, %v177, %v179
    %v182 = vsel %vm180, %v175, %v177
    %v183 = vsel %vm180, %v173, %v175
    %v184 = vsel %vm180, %v179, %v173
    %v185 = vsel %vm160, %v183, 0.0
    %v186 = vsel %vm161, %v182, 0.0
    %v187 = vsel %vm162, %v181, 0.0
    %v188 = vsel %vm163, %v184, 0.0
    %189 = vrot.lane.b32.xlu0 %v21, 111
    %v190 = vpop.permute.xlu0 %189
    %191 = vrot.lane.b32.xlu0 %v22, 111
    %v192 = vpop.permute.xlu0 %191
    %193 = vrot.lane.b32.xlu0 %v23, 111
    %v194 = vpop.permute.xlu0 %193
    %195 = vrot.lane.b32.xlu0 %v24, 111
    %v196 = vpop.permute.xlu0 %195
    %vm197 = vcmp.lt.s32.totalorder %v26, 111
    %v198 = vsel %vm197, %v194, %v196
    %v199 = vsel %vm197, %v192, %v194
    %v200 = vsel %vm197, %v190, %v192
    %v201 = vsel %vm197, %v196, %v190
    %vm202 = vmand %vm160, %vm101
    %vm203 = vmand %vm161, %vm102
    %vm204 = vmand %vm162, %vm103
    %vm205 = vmand %vm163, %vm104
    %v206 = vsel %vm202, %v200, 0.0
    %v207 = vsel %vm203, %v199, 0.0
    %v208 = vsel %vm204, %v198, 0.0
    %v209 = vsel %vm205, %v201, 0.0
    %v210 = vpack.c.bf16 %v84, %v67
    %v211 = vpack.c.bf16 %v85, %v68
    %v212 = vpack.c.bf16 %v86, %v69
    %v213 = vpack.c.bf16 %v87, %v70
    %v214 = vpack.c.bf16 %v126, %v109
    %v215 = vpack.c.bf16 %v127, %v110
    %v216 = vpack.c.bf16 %v128, %v111
    %v217 = vpack.c.bf16 %v129, %v112
    %v218 = vpack.c.bf16 %v143, %v21
    %v219 = vpack.c.bf16 %v144, %v22
    %v220 = vpack.c.bf16 %v145, %v23
    %v221 = vpack.c.bf16 %v146, %v24
    %v222 = vpack.c.bf16 %v185, %v168
    %v223 = vpack.c.bf16 %v186, %v169
    %v224 = vpack.c.bf16 %v187, %v170
    %v225 = vpack.c.bf16 %v188, %v171
    %v226 = vpack.c.bf16 %v206, %v206
    %v227 = vpack.c.bf16 %v207, %v207
    %v228 = vpack.c.bf16 %v208, %v208
    %v229 = vpack.c.bf16 %v209, %v209
    %v230 = vld [vmem:[%s1] sm:$0xf]
    %v231 = vld [vmem:[%s1 + $0x4] sm:$0xf]
    %v232 = vld [vmem:[%s1 + $0x8] sm:$0xf]
    %v233 = vld [vmem:[%s1 + $0xc] sm:$0xf]
    %v234 = vld [vmem:[%s1 + $0x10] sm:$0xf]
    %v235 = vld [vmem:[%s1 + $0x14] sm:$0xf]
    %v236 = vld [vmem:[%s1 + $0x18] sm:$0xf]
    %v237 = vld [vmem:[%s1 + $0x1c] sm:$0xf]
    %v238 = vld [vmem:[%s1 + $0x20] sm:$0xf]
    %v239 = vld [vmem:[%s1 + $0x24] sm:$0xf]
    %v240 = vld [vmem:[%s1 + $0x28] sm:$0xf]
    %v241 = vld [vmem:[%s1 + $0x2c] sm:$0xf]
    %v242 = vld [vmem:[%s1 + $0x30] sm:$0xf]
    %v243 = vld [vmem:[%s1 + $0x34] sm:$0xf]
    %v244 = vld [vmem:[%s1 + $0x38] sm:$0xf]
    %v245 = vld [vmem:[%s1 + $0x3c] sm:$0xf]
    %v246 = vld [vmem:[%s2] sm:$0xff]
    %v247 = vld [vmem:[%s2 + $0x8] sm:$0xff]
    %v248 = vld [vmem:[%s2 + $0x10] sm:$0xff]
    %v249 = vld [vmem:[%s2 + $0x18] sm:$0xff]
    %v250 = vld [vmem:[%s2 + $0x20] sm:$0xff]
    %v251 = vld [vmem:[%s2 + $0x28] sm:$0xff]
    %v252 = vld [vmem:[%s2 + $0x30] sm:$0xff]
    %v253 = vld [vmem:[%s2 + $0x38] sm:$0xff]
    %v254 = vld [vmem:[%s2 + $0x40] sm:$0xff]
    %v255 = vld [vmem:[%s2 + $0x48] sm:$0xff]
    %v256 = vld [vmem:[%s2 + $0x50] sm:$0xff]
    %v257 = vld [vmem:[%s2 + $0x58] sm:$0xff]
    %v258 = vld [vmem:[%s2 + $0x60] sm:$0xff]
    %v259 = vld [vmem:[%s2 + $0x68] sm:$0xff]
    %v260 = vld [vmem:[%s2 + $0x70] sm:$0xff]
    %v261 = vld [vmem:[%s2 + $0x78] sm:$0xff]
    %263 = vset.pattern.permute.xlu0 0
    %264 = vperm.xlu0 %263, %v246
    %v265 = vpop.permute.xlu0 %264
    %268 = vset.pattern.permute.xlu0 0
    %269 = vperm.xlu0 %268, %v247
    %v270 = vpop.permute.xlu0 %269
    %273 = vset.pattern.permute.xlu0 0
    %274 = vperm.xlu0 %273, %v248
    %v275 = vpop.permute.xlu0 %274
    %278 = vset.pattern.permute.xlu0 0
    %279 = vperm.xlu0 %278, %v249
    %v280 = vpop.permute.xlu0 %279
    %283 = vset.pattern.permute.xlu0 0
    %284 = vperm.xlu0 %283, %v250
    %v285 = vpop.permute.xlu0 %284
    %288 = vset.pattern.permute.xlu0 0
    %289 = vperm.xlu0 %288, %v251
    %v290 = vpop.permute.xlu0 %289
    %293 = vset.pattern.permute.xlu0 0
    %294 = vperm.xlu0 %293, %v252
    %v295 = vpop.permute.xlu0 %294
    %298 = vset.pattern.permute.xlu0 0
    %299 = vperm.xlu0 %298, %v253
    %v300 = vpop.permute.xlu0 %299
    %303 = vset.pattern.permute.xlu0 0
    %304 = vperm.xlu0 %303, %v254
    %v305 = vpop.permute.xlu0 %304
    %308 = vset.pattern.permute.xlu0 0
    %309 = vperm.xlu0 %308, %v255
    %v310 = vpop.permute.xlu0 %309
    %313 = vset.pattern.permute.xlu0 0
    %314 = vperm.xlu0 %313, %v256
    %v315 = vpop.permute.xlu0 %314
    %318 = vset.pattern.permute.xlu0 0
    %319 = vperm.xlu0 %318, %v257
    %v320 = vpop.permute.xlu0 %319
    %323 = vset.pattern.permute.xlu0 0
    %324 = vperm.xlu0 %323, %v258
    %v325 = vpop.permute.xlu0 %324
    %328 = vset.pattern.permute.xlu0 0
    %329 = vperm.xlu0 %328, %v259
    %v330 = vpop.permute.xlu0 %329
    %333 = vset.pattern.permute.xlu0 0
    %334 = vperm.xlu0 %333, %v260
    %v335 = vpop.permute.xlu0 %334
    %338 = vset.pattern.permute.xlu0 0
    %339 = vperm.xlu0 %338, %v261
    %v340 = vpop.permute.xlu0 %339
    %v358 = vunpack.c.l.b16 %v230
    %v359 = vunpack.c.l.b16 %v231
    %v360 = vunpack.c.l.b16 %v232
    %v361 = vunpack.c.l.b16 %v233
    %v362 = vunpack.c.l.b16 %v234
    %v363 = vunpack.c.l.b16 %v235
    %v364 = vunpack.c.l.b16 %v236
    %v365 = vunpack.c.l.b16 %v237
    %v366 = vunpack.c.l.b16 %v238
    %v367 = vunpack.c.l.b16 %v239
    %v368 = vunpack.c.l.b16 %v240
    %v369 = vunpack.c.l.b16 %v241
    %v370 = vunpack.c.l.b16 %v242
    %v371 = vunpack.c.l.b16 %v243
    %v372 = vunpack.c.l.b16 %v244
    %v373 = vunpack.c.l.b16 %v245
    %v374 = vpack.c.b16 %v359, %v358
    %v375 = vpack.c.b16 %v361, %v360
    %v376 = vpack.c.b16 %v363, %v362
    %v377 = vpack.c.b16 %v365, %v364
    %v378 = vpack.c.b16 %v367, %v366
    %v379 = vpack.c.b16 %v369, %v368
    %v380 = vpack.c.b16 %v371, %v370
    %v381 = vpack.c.b16 %v373, %v372
    %vm382 = vcmask 588800
    %v384 = vsel %vm382, %v374, 0
    %v387 = vsel %vm382, %v375, 0
    %v390 = vsel %vm382, %v376, 0
    %v393 = vsel %vm382, %v377, 0
    %v396 = vsel %vm382, %v378, 0
    %v399 = vsel %vm382, %v379, 0
    %v402 = vsel %vm382, %v380, 0
    %v405 = vsel %vm382, %v381, 0
    %vm407 = vcmask 1043456
    %v409 = vsel %vm407, %v226, 0
    %v412 = vsel %vm407, %v227, 0
    %v415 = vsel %vm407, %v228, 0
    %v418 = vsel %vm407, %v229, 0
    %420 = vmatprep.subr.bf16.mxu0 0
    %421 = vmatpush1.bf16.msra.mxu0 0
    %422 = vmatprep.subr.bf16.mxu0 0
    %423 = vmatpush1.bf16.msra.mxu0 0
    %424 = vmatprep.subr.bf16.mxu0 0
    %425 = vmatpush1.bf16.msra.mxu0 0
    %426 = vmatprep.subr.bf16.mxu0 %v412
    %427 = vmatpush1.bf16.msra.mxu0 %v409
    %428 = vmatprep.subr.bf16.mxu0 %v223
    %429 = vmatpush1.bf16.msra.mxu0 %v222
    %430 = vmatprep.subr.bf16.mxu0 %v219
    %431 = vmatpush1.bf16.msra.mxu0 %v218
    %432 = vmatprep.subr.bf16.mxu0 %v215
    %433 = vmatpush1.bf16.msra.mxu0 %v214
    %434 = vmatprep.subr.bf16.mxu0 %v211
    %435 = vmatpush1.bf16.msra.mxu0 %v210
    %436 = vmatprep.subr.bf16.mxu0 0
    %437 = vmatpush2.bf16.msra.mxu0 0
    %438 = vmatprep.subr.bf16.mxu0 0
    %439 = vmatpush2.bf16.msra.mxu0 0
    %440 = vmatprep.subr.bf16.mxu0 0
    %441 = vmatpush2.bf16.msra.mxu0 0
    %442 = vmatprep.subr.bf16.mxu0 0
    %443 = vmatpush2.bf16.msra.mxu0 0
    %444 = vmatprep.subr.bf16.mxu0 0
    %445 = vmatpush2.bf16.msra.mxu0 0
    %446 = vmatprep.subr.bf16.mxu0 0
    %447 = vmatpush2.bf16.msra.mxu0 0
    %448 = vmatprep.subr.bf16.mxu0 0
    %449 = vmatpush2.bf16.msra.mxu0 0
    %450 = vmatprep.subr.bf16.mxu0 0
    %451 = vmatpush2.bf16.msra.mxu0 0
    %452 = vmatprep.mubr.bf16.mxu0 0
    %453 = vmatmul.mubr.bf16.gmra.mxu0 %v384
    %v454 = vpop.f32.mrf.mxu0
    %v455 = vadd.f32 %v265, %v454
    %v456 = vpop.f32.mrf.mxu0
    %v457 = vadd.f32 %v265, %v456
    %v458 = vpop.f32.mrf.mxu0
    %v459 = vadd.f32 %v270, %v458
    %v460 = vpop.f32.mrf.mxu0
    %v461 = vadd.f32 %v270, %v460
    %462 = vmatprep.mubr.bf16.mxu0 0
    %463 = vmatmul.mubr.bf16.gmra.mxu0 %v387
    %v464 = vpop.f32.mrf.mxu0
    %v465 = vadd.f32 %v275, %v464
    %v466 = vpop.f32.mrf.mxu0
    %v467 = vadd.f32 %v275, %v466
    %v468 = vpop.f32.mrf.mxu0
    %v469 = vadd.f32 %v280, %v468
    %v470 = vpop.f32.mrf.mxu0
    %v471 = vadd.f32 %v280, %v470
    %472 = vmatprep.mubr.bf16.mxu0 0
    %473 = vmatmul.mubr.bf16.gmra.mxu0 %v390
    %v474 = vpop.f32.mrf.mxu0
    %v475 = vadd.f32 %v285, %v474
    %v476 = vpop.f32.mrf.mxu0
    %v477 = vadd.f32 %v285, %v476
    %v478 = vpop.f32.mrf.mxu0
    %v479 = vadd.f32 %v290, %v478
    %v480 = vpop.f32.mrf.mxu0
    %v481 = vadd.f32 %v290, %v480
    %482 = vmatprep.mubr.bf16.mxu0 0
    %483 = vmatmul.mubr.bf16.gmra.mxu0 %v393
    %v484 = vpop.f32.mrf.mxu0
    %v485 = vadd.f32 %v295, %v484
    %v486 = vpop.f32.mrf.mxu0
    %v487 = vadd.f32 %v295, %v486
    %v488 = vpop.f32.mrf.mxu0
    %v489 = vadd.f32 %v300, %v488
    %v490 = vpop.f32.mrf.mxu0
    %v491 = vadd.f32 %v300, %v490
    %492 = vmatprep.mubr.bf16.mxu0 0
    %493 = vmatmul.mubr.bf16.gmra.mxu0 %v396
    %v494 = vpop.f32.mrf.mxu0
    %v495 = vadd.f32 %v305, %v494
    %v496 = vpop.f32.mrf.mxu0
    %v497 = vadd.f32 %v305, %v496
    %v498 = vpop.f32.mrf.mxu0
    %v499 = vadd.f32 %v310, %v498
    %v500 = vpop.f32.mrf.mxu0
    %v501 = vadd.f32 %v310, %v500
    %502 = vmatprep.mubr.bf16.mxu0 0
    %503 = vmatmul.mubr.bf16.gmra.mxu0 %v399
    %v504 = vpop.f32.mrf.mxu0
    %v505 = vadd.f32 %v315, %v504
    %v506 = vpop.f32.mrf.mxu0
    %v507 = vadd.f32 %v315, %v506
    %v508 = vpop.f32.mrf.mxu0
    %v509 = vadd.f32 %v320, %v508
    %v510 = vpop.f32.mrf.mxu0
    %v511 = vadd.f32 %v320, %v510
    %512 = vmatprep.mubr.bf16.mxu0 0
    %513 = vmatmul.mubr.bf16.gmra.mxu0 %v402
    %v514 = vpop.f32.mrf.mxu0
    %v515 = vadd.f32 %v325, %v514
    %v516 = vpop.f32.mrf.mxu0
    %v517 = vadd.f32 %v325, %v516
    %v518 = vpop.f32.mrf.mxu0
    %v519 = vadd.f32 %v330, %v518
    %v520 = vpop.f32.mrf.mxu0
    %v521 = vadd.f32 %v330, %v520
    %522 = vmatprep.mubr.bf16.mxu0 0
    %523 = vmatmul.mubr.bf16.gmra.mxu0 %v405
    %v524 = vpop.f32.mrf.mxu0
    %v525 = vadd.f32 %v335, %v524
    %v526 = vpop.f32.mrf.mxu0
    %v527 = vadd.f32 %v335, %v526
    %v528 = vpop.f32.mrf.mxu0
    %v529 = vadd.f32 %v340, %v528
    %v530 = vpop.f32.mrf.mxu0
    %v531 = vadd.f32 %v340, %v530
    %532 = vdwg.mxu0
    %533 = vmatprep.subr.bf16.mxu0 0
    %534 = vmatpush1.bf16.msra.mxu0 0
    %535 = vmatprep.subr.bf16.mxu0 0
    %536 = vmatpush1.bf16.msra.mxu0 0
    %537 = vmatprep.subr.bf16.mxu0 0
    %538 = vmatpush1.bf16.msra.mxu0 0
    %539 = vmatprep.subr.bf16.mxu0 %v418
    %540 = vmatpush1.bf16.msra.mxu0 %v415
    %541 = vmatprep.subr.bf16.mxu0 %v225
    %542 = vmatpush1.bf16.msra.mxu0 %v224
    %543 = vmatprep.subr.bf16.mxu0 %v221
    %544 = vmatpush1.bf16.msra.mxu0 %v220
    %545 = vmatprep.subr.bf16.mxu0 %v217
    %546 = vmatpush1.bf16.msra.mxu0 %v216
    %547 = vmatprep.subr.bf16.mxu0 %v213
    %548 = vmatpush1.bf16.msra.mxu0 %v212
    %549 = vmatprep.subr.bf16.mxu0 0
    %550 = vmatpush2.bf16.msra.mxu0 0
    %551 = vmatprep.subr.bf16.mxu0 0
    %552 = vmatpush2.bf16.msra.mxu0 0
    %553 = vmatprep.subr.bf16.mxu0 0
    %554 = vmatpush2.bf16.msra.mxu0 0
    %555 = vmatprep.subr.bf16.mxu0 0
    %556 = vmatpush2.bf16.msra.mxu0 0
    %557 = vmatprep.subr.bf16.mxu0 0
    %558 = vmatpush2.bf16.msra.mxu0 0
    %559 = vmatprep.subr.bf16.mxu0 0
    %560 = vmatpush2.bf16.msra.mxu0 0
    %561 = vmatprep.subr.bf16.mxu0 0
    %562 = vmatpush2.bf16.msra.mxu0 0
    %563 = vmatprep.subr.bf16.mxu0 0
    %564 = vmatpush2.bf16.msra.mxu0 0
    %565 = vmatprep.mubr.bf16.mxu0 0
    %566 = vmatmul.mubr.bf16.gmra.mxu0 %v384
    %v567 = vpop.f32.mrf.mxu0
    %v568 = vadd.f32 %v265, %v567
    %v569 = vpop.f32.mrf.mxu0
    %v570 = vadd.f32 %v265, %v569
    %v571 = vpop.f32.mrf.mxu0
    %v572 = vadd.f32 %v270, %v571
    %v573 = vpop.f32.mrf.mxu0
    %v574 = vadd.f32 %v270, %v573
    %575 = vmatprep.mubr.bf16.mxu0 0
    %576 = vmatmul.mubr.bf16.gmra.mxu0 %v387
    %v577 = vpop.f32.mrf.mxu0
    %v578 = vadd.f32 %v275, %v577
    %v579 = vpop.f32.mrf.mxu0
    %v580 = vadd.f32 %v275, %v579
    %v581 = vpop.f32.mrf.mxu0
    %v582 = vadd.f32 %v280, %v581
    %v583 = vpop.f32.mrf.mxu0
    %v584 = vadd.f32 %v280, %v583
    %585 = vmatprep.mubr.bf16.mxu0 0
    %586 = vmatmul.mubr.bf16.gmra.mxu0 %v390
    %v587 = vpop.f32.mrf.mxu0
    %v588 = vadd.f32 %v285, %v587
    %v589 = vpop.f32.mrf.mxu0
    %v590 = vadd.f32 %v285, %v589
    %v591 = vpop.f32.mrf.mxu0
    %v592 = vadd.f32 %v290, %v591
    %v593 = vpop.f32.mrf.mxu0
    %v594 = vadd.f32 %v290, %v593
    %595 = vmatprep.mubr.bf16.mxu0 0
    %596 = vmatmul.mubr.bf16.gmra.mxu0 %v393
    %v597 = vpop.f32.mrf.mxu0
    %v598 = vadd.f32 %v295, %v597
    %v599 = vpop.f32.mrf.mxu0
    %v600 = vadd.f32 %v295, %v599
    %v601 = vpop.f32.mrf.mxu0
    %v602 = vadd.f32 %v300, %v601
    %v603 = vpop.f32.mrf.mxu0
    %v604 = vadd.f32 %v300, %v603
    %605 = vmatprep.mubr.bf16.mxu0 0
    %606 = vmatmul.mubr.bf16.gmra.mxu0 %v396
    %v607 = vpop.f32.mrf.mxu0
    %v608 = vadd.f32 %v305, %v607
    %v609 = vpop.f32.mrf.mxu0
    %v610 = vadd.f32 %v305, %v609
    %v611 = vpop.f32.mrf.mxu0
    %v612 = vadd.f32 %v310, %v611
    %v613 = vpop.f32.mrf.mxu0
    %v614 = vadd.f32 %v310, %v613
    %615 = vmatprep.mubr.bf16.mxu0 0
    %616 = vmatmul.mubr.bf16.gmra.mxu0 %v399
    %v617 = vpop.f32.mrf.mxu0
    %v618 = vadd.f32 %v315, %v617
    %v619 = vpop.f32.mrf.mxu0
    %v620 = vadd.f32 %v315, %v619
    %v621 = vpop.f32.mrf.mxu0
    %v622 = vadd.f32 %v320, %v621
    %v623 = vpop.f32.mrf.mxu0
    %v624 = vadd.f32 %v320, %v623
    %625 = vmatprep.mubr.bf16.mxu0 0
    %626 = vmatmul.mubr.bf16.gmra.mxu0 %v402
    %v627 = vpop.f32.mrf.mxu0
    %v628 = vadd.f32 %v325, %v627
    %v629 = vpop.f32.mrf.mxu0
    %v630 = vadd.f32 %v325, %v629
    %v631 = vpop.f32.mrf.mxu0
    %v632 = vadd.f32 %v330, %v631
    %v633 = vpop.f32.mrf.mxu0
    %v634 = vadd.f32 %v330, %v633
    %635 = vmatprep.mubr.bf16.mxu0 0
    %636 = vmatmul.mubr.bf16.gmra.mxu0 %v405
    %v637 = vpop.f32.mrf.mxu0
    %v638 = vadd.f32 %v335, %v637
    %v639 = vpop.f32.mrf.mxu0
    %v640 = vadd.f32 %v335, %v639
    %v641 = vpop.f32.mrf.mxu0
    %v642 = vadd.f32 %v340, %v641
    %v643 = vpop.f32.mrf.mxu0
    %v644 = vadd.f32 %v340, %v643
    %645 = vdwg.mxu0
    %v646 = vmax.f32 %v455, 0.0
    %v647 = vmax.f32 %v457, 0.0
    %v648 = vmax.f32 %v568, 0.0
    %v649 = vmax.f32 %v570, 0.0
    %v650 = vmax.f32 %v459, 0.0
    %v651 = vmax.f32 %v461, 0.0
    %v652 = vmax.f32 %v572, 0.0
    %v653 = vmax.f32 %v574, 0.0
    %v654 = vmax.f32 %v465, 0.0
    %v655 = vmax.f32 %v467, 0.0
    %v656 = vmax.f32 %v578, 0.0
    %v657 = vmax.f32 %v580, 0.0
    %v658 = vmax.f32 %v469, 0.0
    %v659 = vmax.f32 %v471, 0.0
    %v660 = vmax.f32 %v582, 0.0
    %v661 = vmax.f32 %v584, 0.0
    %v662 = vmax.f32 %v475, 0.0
    %v663 = vmax.f32 %v477, 0.0
    %v664 = vmax.f32 %v588, 0.0
    %v665 = vmax.f32 %v590, 0.0
    %v666 = vmax.f32 %v479, 0.0
    %v667 = vmax.f32 %v481, 0.0
    %v668 = vmax.f32 %v592, 0.0
    %v669 = vmax.f32 %v594, 0.0
    %v670 = vmax.f32 %v485, 0.0
    %v671 = vmax.f32 %v487, 0.0
    %v672 = vmax.f32 %v598, 0.0
    %v673 = vmax.f32 %v600, 0.0
    %v674 = vmax.f32 %v489, 0.0
    %v675 = vmax.f32 %v491, 0.0
    %v676 = vmax.f32 %v602, 0.0
    %v677 = vmax.f32 %v604, 0.0
    %v678 = vmax.f32 %v495, 0.0
    %v679 = vmax.f32 %v497, 0.0
    %v680 = vmax.f32 %v608, 0.0
    %v681 = vmax.f32 %v610, 0.0
    %v682 = vmax.f32 %v499, 0.0
    %v683 = vmax.f32 %v501, 0.0
    %v684 = vmax.f32 %v612, 0.0
    %v685 = vmax.f32 %v614, 0.0
    %v686 = vmax.f32 %v505, 0.0
    %v687 = vmax.f32 %v507, 0.0
    %v688 = vmax.f32 %v618, 0.0
    %v689 = vmax.f32 %v620, 0.0
    %v690 = vmax.f32 %v509, 0.0
    %v691 = vmax.f32 %v511, 0.0
    %v692 = vmax.f32 %v622, 0.0
    %v693 = vmax.f32 %v624, 0.0
    %v694 = vmax.f32 %v515, 0.0
    %v695 = vmax.f32 %v517, 0.0
    %v696 = vmax.f32 %v628, 0.0
    %v697 = vmax.f32 %v630, 0.0
    %v698 = vmax.f32 %v519, 0.0
    %v699 = vmax.f32 %v521, 0.0
    %v700 = vmax.f32 %v632, 0.0
    %v701 = vmax.f32 %v634, 0.0
    %v702 = vmax.f32 %v525, 0.0
    %v703 = vmax.f32 %v527, 0.0
    %v704 = vmax.f32 %v638, 0.0
    %v705 = vmax.f32 %v640, 0.0
    %v706 = vmax.f32 %v529, 0.0
    %v707 = vmax.f32 %v531, 0.0
    %v708 = vmax.f32 %v642, 0.0
    %v709 = vmax.f32 %v644, 0.0
    %v710 = vld [vmem:[%s3] sm:$0xf]
    %v711 = vpack.c.bf16 %v650, %v646
    %v712 = vpack.c.bf16 %v651, %v647
    %v713 = vpack.c.bf16 %v652, %v648
    %v714 = vpack.c.bf16 %v653, %v649
    %v715 = vpack.c.bf16 %v658, %v654
    %v716 = vpack.c.bf16 %v659, %v655
    %v717 = vpack.c.bf16 %v660, %v656
    %v718 = vpack.c.bf16 %v661, %v657
    %v719 = vpack.c.bf16 %v666, %v662
    %v720 = vpack.c.bf16 %v667, %v663
    %v721 = vpack.c.bf16 %v668, %v664
    %v722 = vpack.c.bf16 %v669, %v665
    %v723 = vpack.c.bf16 %v674, %v670
    %v724 = vpack.c.bf16 %v675, %v671
    %v725 = vpack.c.bf16 %v676, %v672
    %v726 = vpack.c.bf16 %v677, %v673
    %v727 = vpack.c.bf16 %v682, %v678
    %v728 = vpack.c.bf16 %v683, %v679
    %v729 = vpack.c.bf16 %v684, %v680
    %v730 = vpack.c.bf16 %v685, %v681
    %v731 = vpack.c.bf16 %v690, %v686
    %v732 = vpack.c.bf16 %v691, %v687
    %v733 = vpack.c.bf16 %v692, %v688
    %v734 = vpack.c.bf16 %v693, %v689
    %v735 = vpack.c.bf16 %v698, %v694
    %v736 = vpack.c.bf16 %v699, %v695
    %v737 = vpack.c.bf16 %v700, %v696
    %v738 = vpack.c.bf16 %v701, %v697
    %v739 = vpack.c.bf16 %v706, %v702
    %v740 = vpack.c.bf16 %v707, %v703
    %v741 = vpack.c.bf16 %v708, %v704
    %v742 = vpack.c.bf16 %v709, %v705
    %v745 = vunpack.c.l.s4 1966171168
    %v746 = vunpack.c.0.s8 %v745
    %v747 = vlaneseq
    %v748 = vshrl.u32 %v747, 7
    %v749 = vsub.s32 %v746, %v748
    %v750 = vrot.slane %v710, %v749
    %v751 = vcombine.high %v750, %v750
    %v753 = vunpack.c.l.s4 1966171168
    %v754 = vunpack.c.0.s8 %v753
    %v755 = vlaneseq
    %v756 = vshrl.u32 %v755, 7
    %v757 = vsub.s32 %v754, %v756
    %v758 = vrot.slane %v750, %v757
    %v760 = vunpack.c.l.s4 1966171168
    %v761 = vunpack.c.0.s8 %v760
    %v762 = vlaneseq
    %v763 = vshrl.u32 %v762, 7
    %v764 = vsub.s32 %v761, %v763
    %v765 = vrot.slane %v751, %v764
    %v766 = vcombine.high %v758, %v758
    %v767 = vcombine.high %v765, %v765
    %772 = vmatprep.subr.bf16.mxu0 %v740
    %773 = vmatpush1.bf16.xpose.msra.mxu0 %v739
    %774 = vmatprep.subr.bf16.mxu0 %v736
    %775 = vmatpush1.bf16.xpose.msra.mxu0 %v735
    %776 = vmatprep.subr.bf16.mxu0 %v732
    %777 = vmatpush1.bf16.xpose.msra.mxu0 %v731
    %778 = vmatprep.subr.bf16.mxu0 %v728
    %779 = vmatpush1.bf16.xpose.msra.mxu0 %v727
    %780 = vmatprep.subr.bf16.mxu0 %v724
    %781 = vmatpush1.bf16.xpose.msra.mxu0 %v723
    %782 = vmatprep.subr.bf16.mxu0 %v720
    %783 = vmatpush1.bf16.xpose.msra.mxu0 %v719
    %784 = vmatprep.subr.bf16.mxu0 %v716
    %785 = vmatpush1.bf16.xpose.msra.mxu0 %v715
    %786 = vmatprep.subr.bf16.mxu0 %v712
    %787 = vmatpush1.bf16.xpose.msra.mxu0 %v711
    %788 = vmatprep.subr.bf16.mxu0 0
    %789 = vmatpush2.bf16.xpose.msra.mxu0 0
    %790 = vmatprep.subr.bf16.mxu0 0
    %791 = vmatpush2.bf16.xpose.msra.mxu0 0
    %792 = vmatprep.subr.bf16.mxu0 0
    %793 = vmatpush2.bf16.xpose.msra.mxu0 0
    %794 = vmatprep.subr.bf16.mxu0 0
    %795 = vmatpush2.bf16.xpose.msra.mxu0 0
    %796 = vmatprep.subr.bf16.mxu0 0
    %797 = vmatpush2.bf16.xpose.msra.mxu0 0
    %798 = vmatprep.subr.bf16.mxu0 0
    %799 = vmatpush2.bf16.xpose.msra.mxu0 0
    %800 = vmatprep.subr.bf16.mxu0 0
    %801 = vmatpush2.bf16.xpose.msra.mxu0 0
    %802 = vmatprep.subr.bf16.mxu0 0
    %803 = vmatpush2.bf16.xpose.msra.mxu0 0
    %804 = vmatprep.mubr.bf16.mxu0 %v765
    %805 = vmatmul.mubr.bf16.gmra.mxu0 %v758
    %v806 = vpop.f32.mrf.mxu0
    %v807 = vadd.f32 0.0, %v806
    %v808 = vpop.f32.mrf.mxu0
    %v809 = vpop.f32.mrf.mxu0
    %v810 = vpop.f32.mrf.mxu0
    %811 = vdwg.mxu0
    %812 = vmatprep.subr.bf16.mxu0 %v742
    %813 = vmatpush1.bf16.xpose.msra.mxu0 %v741
    %814 = vmatprep.subr.bf16.mxu0 %v738
    %815 = vmatpush1.bf16.xpose.msra.mxu0 %v737
    %816 = vmatprep.subr.bf16.mxu0 %v734
    %817 = vmatpush1.bf16.xpose.msra.mxu0 %v733
    %818 = vmatprep.subr.bf16.mxu0 %v730
    %819 = vmatpush1.bf16.xpose.msra.mxu0 %v729
    %820 = vmatprep.subr.bf16.mxu0 %v726
    %821 = vmatpush1.bf16.xpose.msra.mxu0 %v725
    %822 = vmatprep.subr.bf16.mxu0 %v722
    %823 = vmatpush1.bf16.xpose.msra.mxu0 %v721
    %824 = vmatprep.subr.bf16.mxu0 %v718
    %825 = vmatpush1.bf16.xpose.msra.mxu0 %v717
    %826 = vmatprep.subr.bf16.mxu0 %v714
    %827 = vmatpush1.bf16.xpose.msra.mxu0 %v713
    %828 = vmatprep.subr.bf16.mxu0 0
    %829 = vmatpush2.bf16.xpose.msra.mxu0 0
    %830 = vmatprep.subr.bf16.mxu0 0
    %831 = vmatpush2.bf16.xpose.msra.mxu0 0
    %832 = vmatprep.subr.bf16.mxu0 0
    %833 = vmatpush2.bf16.xpose.msra.mxu0 0
    %834 = vmatprep.subr.bf16.mxu0 0
    %835 = vmatpush2.bf16.xpose.msra.mxu0 0
    %836 = vmatprep.subr.bf16.mxu0 0
    %837 = vmatpush2.bf16.xpose.msra.mxu0 0
    %838 = vmatprep.subr.bf16.mxu0 0
    %839 = vmatpush2.bf16.xpose.msra.mxu0 0
    %840 = vmatprep.subr.bf16.mxu0 0
    %841 = vmatpush2.bf16.xpose.msra.mxu0 0
    %842 = vmatprep.subr.bf16.mxu0 0
    %843 = vmatpush2.bf16.xpose.msra.mxu0 0
    %844 = vmatprep.mubr.bf16.mxu0 %v767
    %845 = vmatmul.mubr.bf16.gmra.mxu0 %v766
    %v846 = vpop.f32.mrf.mxu0
    %v847 = vadd.f32 %v807, %v846
    %v848 = vpop.f32.mrf.mxu0
    %v849 = vpop.f32.mrf.mxu0
    %v850 = vpop.f32.mrf.mxu0
    %851 = vdwg.mxu0
    %v852 = vmul.f32 %v847, 0.00390625
    %853 = vst [vmem:[#allocation2] sm:$0x3] %v852
    // Predicated region
    $region18: #{feature_extractor_forward.1} parent=1 // pred_check
      _
    $region19: #{feature_extractor_forward.1} parent=1 // pred_check_branch
      %855 = sbr.rel (0) target = $region21
    $region20: #{feature_extractor_forward.1} parent=1 // pred_region
      %s857 = ssub.s32 32, 32
      %858 = vsyncadd [#allocation3], %s857
      %s860 = sshll.u32 [#allocation2], 4
      %s861 = int_to_ptr.vmem [resolvable:$true] %s860
      %863 = dma.vmem_to_hbm [thread:$0]  %s861, 32, %s4, [#allocation3]
    $region21: #{feature_extractor_forward.1} parent=1 // pred_fallthru
      _
    // Predicated region
    $region22: #{feature_extractor_forward.1} parent=1 // pred_check
      _
    $region23: #{feature_extractor_forward.1} parent=1 // pred_check_branch
      %865 = sbr.rel (0) target = $region25
    $region24: #{feature_extractor_forward.1} parent=1 // pred_region
      %866 = dma.done [#allocation3], 32
    $region25: #{feature_extractor_forward.1} parent=1 // pred_fallthru
      _
    %867 = vsyncpa [#allocation3], 1

</llo_original>
